<compile_context>
chip_gen: v7x
topology: tpu7x:2x2x1
jax: 0.10.0
libtpu: 0.0.40
codegen_flags: <defaults>
</compile_context>

<pallas_src>
import math
import functools

import jax
import jax.numpy as jnp
from jax import lax
from jax.experimental import pallas as pl
from jax.experimental.pallas import tpu as pltpu


_VMEM_LIMIT = 32 * 1024 * 1024


def _cparams(ngrid=1):
    return pltpu.CompilerParams(
        dimension_semantics=("parallel",) * ngrid,
        vmem_limit_bytes=_VMEM_LIMIT,
    )


# ----------------------------------------------------------------------------
# tiling helpers
# ----------------------------------------------------------------------------
def _pick_row_tile(m, max_rows=256):
    """Row tile: multiple of 8 dividing m, <= max_rows, and >= 2 grid steps when possible."""
    if m >= 16 and m % 8 == 0:
        cap = min(max_rows, m // 2)
        cap -= cap % 8
        for t in range(cap, 7, -8):
            if m % t == 0:
                return t
    return m  # small / irregular: single full block (last-2 dims equal full array dims)


def _pick_leading_tile(b, per_item_bytes, budget=2 * 1024 * 1024):
    """Leading (batch) tile: divisor of b, ~budget bytes, >= 2 grid steps when possible."""
    cap = max(1, int(budget) // max(int(per_item_bytes), 1))
    if b >= 2:
        cap = min(cap, b // 2)
    cap = max(1, min(cap, b))
    for t in range(cap, 0, -1):
        if b % t == 0:
            return t
    return 1


# ----------------------------------------------------------------------------
# Kernel 1: Linear (+ bias, optional relu, optional residual add)
# ----------------------------------------------------------------------------
def _linear_kernel(*refs, activation, has_residual, matmul_dtype):
    if has_residual:
        x_ref, w_ref, b_ref, r_ref, o_ref = refs
    else:
        x_ref, w_ref, b_ref, o_ref = refs
        r_ref = None
    y = jnp.dot(x_ref[...].astype(matmul_dtype), w_ref[...].astype(matmul_dtype),
                preferred_element_type=jnp.float32)
    y = y + b_ref[...]
    if activation == "relu":
        y = jnp.maximum(y, 0.0)
    if r_ref is not None:
        y = r_ref[...].astype(jnp.float32) + y
    o_ref[...] = y.astype(o_ref.dtype)


def pallas_linear(x, w, b, *, activation=None, residual=None, matmul_dtype=jnp.float32):
    m, k = x.shape
    kw, n = w.shape
    assert k == kw
    tm = _pick_row_tile(m)
    in_specs = [
        pl.BlockSpec((tm, k), lambda i: (i, 0)),   # x rows, tiled over the grid
        pl.BlockSpec((k, n), lambda i: (0, 0)),    # weight: grid-resident
        pl.BlockSpec((1, n), lambda i: (0, 0)),    # bias:   grid-resident
    ]
    args = [x, w, b.reshape(1, n)]
    if residual is not None:
        in_specs.append(pl.BlockSpec((tm, n), lambda i: (i, 0)))
        args.append(residual)
    kernel = functools.partial(_linear_kernel, activation=activation,
                               has_residual=residual is not None, matmul_dtype=matmul_dtype)
    return pl.pallas_call(
        kernel,
        out_shape=jax.ShapeDtypeStruct((m, n), x.dtype),
        grid=(m // tm,),
        in_specs=in_specs,
        out_specs=pl.BlockSpec((tm, n), lambda i: (i, 0)),
        compiler_params=_cparams(),
    )(*args)


# ----------------------------------------------------------------------------
# Kernel 2: fused LayerNorm + Linear (pre-LN QKV projection)
# ----------------------------------------------------------------------------
def _ln_linear_kernel(x_ref, g_ref, bln_ref, w_ref, b_ref, o_ref, *, eps, matmul_dtype):
    x = x_ref[...].astype(jnp.float32)
    mu = jnp.mean(x, axis=-1, keepdims=True)
    xc = x - mu
    var = jnp.mean(xc * xc, axis=-1, keepdims=True)
    xn = xc * lax.rsqrt(var + eps) * g_ref[...] + bln_ref[...]
    y = jnp.dot(xn.astype(matmul_dtype), w_ref[...].astype(matmul_dtype),
                preferred_element_type=jnp.float32) + b_ref[...]
    o_ref[...] = y.astype(o_ref.dtype)


def pallas_ln_linear(x, g, bln, w, b, *, eps=1e-5, matmul_dtype=jnp.float32):
    m, d = x.shape
    _, n = w.shape
    tm = _pick_row_tile(m)
    return pl.pallas_call(
        functools.partial(_ln_linear_kernel, eps=eps, matmul_dtype=matmul_dtype),
        out_shape=jax.ShapeDtypeStruct((m, n), x.dtype),
        grid=(m // tm,),
        in_specs=[pl.BlockSpec((tm, d), lambda i: (i, 0)),
                  pl.BlockSpec((1, d), lambda i: (0, 0)),
                  pl.BlockSpec((1, d), lambda i: (0, 0)),
                  pl.BlockSpec((d, n), lambda i: (0, 0)),
                  pl.BlockSpec((1, n), lambda i: (0, 0))],
        out_specs=pl.BlockSpec((tm, n), lambda i: (i, 0)),
        compiler_params=_cparams(),
    )(x, g, bln, w, b.reshape(1, n))


# ----------------------------------------------------------------------------
# Kernel 3: fused LayerNorm + FFN (W1 -> relu -> W2) + residual add
# ----------------------------------------------------------------------------
def _ln_ffn_kernel(x_ref, g_ref, bln_ref, w1_ref, b1_ref, w2_ref, b2_ref, o_ref,
                   *, eps, matmul_dtype):
    x = x_ref[...].astype(jnp.float32)
    mu = jnp.mean(x, axis=-1, keepdims=True)
    xc = x - mu
    var = jnp.mean(xc * xc, axis=-1, keepdims=True)
    xn = xc * lax.rsqrt(var + eps) * g_ref[...] + bln_ref[...]
    h = jnp.dot(xn.astype(matmul_dtype), w1_ref[...].astype(matmul_dtype),
                preferred_element_type=jnp.float32) + b1_ref[...]
    h = jnp.maximum(h, 0.0)
    y = jnp.dot(h.astype(matmul_dtype), w2_ref[...].astype(matmul_dtype),
                preferred_element_type=jnp.float32) + b2_ref[...]
    o_ref[...] = (x + y).astype(o_ref.dtype)


def pallas_ln_ffn(x, g, bln, w1, b1, w2, b2, *, eps=1e-5, matmul_dtype=jnp.float32):
    m, d = x.shape
    _, dff = w1.shape
    tm = _pick_row_tile(m)
    return pl.pallas_call(
        functools.partial(_ln_ffn_kernel, eps=eps, matmul_dtype=matmul_dtype),
        out_shape=jax.ShapeDtypeStruct((m, d), x.dtype),
        grid=(m // tm,),
        in_specs=[pl.BlockSpec((tm, d), lambda i: (i, 0)),
                  pl.BlockSpec((1, d), lambda i: (0, 0)),
                  pl.BlockSpec((1, d), lambda i: (0, 0)),
                  pl.BlockSpec((d, dff), lambda i: (0, 0)),
                  pl.BlockSpec((1, dff), lambda i: (0, 0)),
                  pl.BlockSpec((dff, d), lambda i: (0, 0)),
                  pl.BlockSpec((1, d), lambda i: (0, 0))],
        out_specs=pl.BlockSpec((tm, d), lambda i: (i, 0)),
        compiler_params=_cparams(),
    )(x, g, bln, w1, b1.reshape(1, dff), w2, b2.reshape(1, d))


# ----------------------------------------------------------------------------
# Kernel 4: fused limb_embed matmul * sqrt(d_model) + positional-encoding add
# ----------------------------------------------------------------------------
def _embed_pe_kernel(x_ref, w_ref, b_ref, pe_ref, o_ref, *, scale, matmul_dtype):
    x = x_ref[...]                                # (tb, S, L)
    tb, s, l = x.shape
    y = jnp.dot(x.reshape(tb * s, l).astype(matmul_dtype),
                w_ref[...].astype(matmul_dtype),
                preferred_element_type=jnp.float32)
    y = (y + b_ref[...]) * scale                  # (obs @ W + b) * sqrt(D), matching torch
    y = y.reshape(tb, s, -1) + pe_ref[...]        # + pe, broadcast over the batch tile
    o_ref[...] = y.astype(o_ref.dtype)


def pallas_embed_pe(obs_bsl, w, b, pe_1sd, *, scale, matmul_dtype=jnp.float32):
    bsz, s, l = obs_bsl.shape
    _, d = w.shape
    per_b = s * (l + d) * 4
    tb = _pick_leading_tile(bsz, per_b)
    return pl.pallas_call(
        functools.partial(_embed_pe_kernel, scale=scale, matmul_dtype=matmul_dtype),
        out_shape=jax.ShapeDtypeStruct((bsz, s, d), obs_bsl.dtype),
        grid=(bsz // tb,),
        in_specs=[pl.BlockSpec((tb, s, l), lambda i: (i, 0, 0)),
                  pl.BlockSpec((l, d), lambda i: (0, 0)),
                  pl.BlockSpec((1, d), lambda i: (0, 0)),
                  pl.BlockSpec((1, s, d), lambda i: (0, 0, 0))],
        out_specs=pl.BlockSpec((tb, s, d), lambda i: (i, 0, 0)),
        compiler_params=_cparams(),
    )(obs_bsl, w, b.reshape(1, d), pe_1sd)


# ----------------------------------------------------------------------------
# Kernel 5: blocked multi-head attention with key-padding mask
#   qkv is the raw (B, S, 3D) in_proj output (batch-first), heads split in-kernel with
#   static column slices; concatenated-head output feeds out_proj with no transposes.
# ----------------------------------------------------------------------------
def _mha_kernel(qkv_ref, mask_ref, o_ref, *, nhead, head_dim, sm_scale, matmul_dtype):
    qkv = qkv_ref[...]                            # (tb, S, 3D)
    d = nhead * head_dim
    neg = mask_ref[...] * 1e30                    # (tb, 1, S), 1.0 where key is padded
    outs = []
    for h in range(nhead):
        q = qkv[:, :, h * head_dim:(h + 1) * head_dim].astype(matmul_dtype)
        k = qkv[:, :, d + h * head_dim:d + (h + 1) * head_dim].astype(matmul_dtype)
        v = qkv[:, :, 2 * d + h * head_dim:2 * d + (h + 1) * head_dim].astype(matmul_dtype)
        s = jnp.einsum("bqd,bkd->bqk", q, k,
                       preferred_element_type=jnp.float32) * sm_scale      # (tb, S, S)
        s = s - neg
        s = s - jnp.max(s, axis=-1, keepdims=True)
        p = jnp.exp(s)
        # NOTE: rows whose keys are all padded get a uniform softmax (finite), unlike torch NaN;
        # the model guarantees >=1 unpadded limb.
        p = p / jnp.sum(p, axis=-1, keepdims=True)
        o = jnp.einsum("bqk,bkd->bqd", p.astype(matmul_dtype), v,
                       preferred_element_type=jnp.float32)                 # (tb, S, hd)
        outs.append(o)
    o_ref[...] = jnp.concatenate(outs, axis=-1).astype(o_ref.dtype)        # lane-dense store


def pallas_mha(qkv_bsd3, mask_b1s, *, nhead, sm_scale, matmul_dtype=jnp.float32):
    bsz, s, d3 = qkv_bsd3.shape
    d = d3 // 3
    head_dim = d // nhead
    per_b = s * (d3 + d) * 4 + nhead * s * s * 4
    tb = _pick_leading_tile(bsz, per_b)
    return pl.pallas_call(
        functools.partial(_mha_kernel, nhead=nhead, head_dim=head_dim,
                          sm_scale=sm_scale, matmul_dtype=matmul_dtype),
        out_shape=jax.ShapeDtypeStruct((bsz, s, d), qkv_bsd3.dtype),
        grid=(bsz // tb,),
        in_specs=[pl.BlockSpec((tb, s, d3), lambda i: (i, 0, 0)),
                  pl.BlockSpec((tb, 1, s), lambda i: (i, 0, 0))],
        out_specs=pl.BlockSpec((tb, s, d), lambda i: (i, 0, 0)),
        compiler_params=_cparams(),
    )(qkv_bsd3, mask_b1s)


# ----------------------------------------------------------------------------
# Parameters (sinusoidal PE table + random weights)
# ----------------------------------------------------------------------------
def make_pe_table(d_model, seq_len, dtype=jnp.float32):
    position = jnp.arange(seq_len, dtype=jnp.float32)[:, None]
    div_term = jnp.exp(jnp.arange(0, d_model, 2, dtype=jnp.float32)
                       * (-math.log(10000.0) / d_model))
    pe = jnp.zeros((seq_len, 1, d_model), dtype=jnp.float32)
    pe = pe.at[:, 0, 0::2].set(jnp.sin(position * div_term))
    pe = pe.at[:, 0, 1::2].set(jnp.cos(position * div_term))
    return pe.astype(dtype)


def init_params(key, *, seq_len, limb_obs, d_model, nhead, dff, nlayers,
                hfield_dim, ext_hidden, decoder_dims, out_dim):
    keys = iter(jax.random.split(key, 64))

    def lin_init(k, fan_in, fan_out, scale=None):
        if scale is None:
            scale = 1.0 / math.sqrt(fan_in)
        w = jax.random.uniform(k, (fan_in, fan_out), jnp.float32, -scale, scale)
        return w, jnp.zeros((fan_out,), jnp.float32)

    p = {}
    p["limb_embed_w"], p["limb_embed_b"] = lin_init(next(keys), limb_obs, d_model, scale=0.1)
    p["pe"] = make_pe_table(d_model, seq_len)

    dims = [hfield_dim] + list(ext_hidden)
    p["hfield"] = [lin_init(next(keys), a, b) for a, b in zip(dims[:-1], dims[1:])]

    layers = []
    for _ in range(nlayers):
        L = {
            "ln1_g": jnp.ones((1, d_model), jnp.float32),
            "ln1_b": jnp.zeros((1, d_model), jnp.float32),
            "ln2_g": jnp.ones((1, d_model), jnp.float32),
            "ln2_b": jnp.zeros((1, d_model), jnp.float32),
        }
        L["in_proj_w"], L["in_proj_b"] = lin_init(next(keys), d_model, 3 * d_model)
        L["out_proj_w"], L["out_proj_b"] = lin_init(next(keys), d_model, d_model)
        L["ffn_w1"], L["ffn_b1"] = lin_init(next(keys), d_model, dff)
        L["ffn_w2"], L["ffn_b2"] = lin_init(next(keys), dff, d_model)
        layers.append(L)
    p["layers"] = layers

    ddims = [d_model + ext_hidden[-1]] + list(decoder_dims) + [out_dim]
    dec = []
    for i, (a, b) in enumerate(zip(ddims[:-1], ddims[1:])):
        scale = 0.1 if i == len(ddims) - 2 else None   # DECODER_INIT on the last layer
        dec.append(lin_init(next(keys), a, b, scale=scale))
    p["decoder"] = dec
    return p


# ----------------------------------------------------------------------------
# Full forward pass (Pallas, batch-first internal layout) and a pure-JAX reference
# ----------------------------------------------------------------------------
def transformer_forward(params, obs, obs_mask, hfield, *, nhead, matmul_dtype=jnp.float32):
    S, B, L = obs.shape
    D = params["limb_embed_w"].shape[1]
    hd = D // nhead
    assert D % nhead == 0

    # single small layout change: seq-first torch input -> batch-first internal layout
    obs_bsl = jnp.transpose(obs, (1, 0, 2))                # (B, S, L)
    pe_1sd = jnp.transpose(params["pe"], (1, 0, 2))        # (1, S, D)

    # fused limb_embed * sqrt(D) + positional encoding (eval-mode dropout = identity)
    x = pallas_embed_pe(obs_bsl, params["limb_embed_w"], params["limb_embed_b"], pe_1sd,
                        scale=math.sqrt(D), matmul_dtype=matmul_dtype)      # (B, S, D)

    # hfield MLP encoder (ReLU after every layer, matching make_mlp_default)
    h = hfield
    for w, b in params["hfield"]:
        h = pallas_linear(h, w, b, activation="relu", matmul_dtype=matmul_dtype)

    mask_b1s = obs_mask.astype(jnp.float32).reshape(B, 1, S)

    x2d = x.reshape(B * S, D)
    for Lp in params["layers"]:
        # pre-LN self-attention block: LN1 fused into the QKV projection
        qkv = pallas_ln_linear(x2d, Lp["ln1_g"], Lp["ln1_b"],
                               Lp["in_proj_w"], Lp["in_proj_b"],
                               matmul_dtype=matmul_dtype)                   # (B*S, 3D)
        a = pallas_mha(qkv.reshape(B, S, 3 * D), mask_b1s, nhead=nhead,
                       sm_scale=1.0 / math.sqrt(hd), matmul_dtype=matmul_dtype)  # (B, S, D)
        x2d = pallas_linear(a.reshape(B * S, D), Lp["out_proj_w"], Lp["out_proj_b"],
                            residual=x2d, matmul_dtype=matmul_dtype)
        # pre-LN feed-forward block, fully fused (dff intermediate stays in VMEM)
        x2d = pallas_ln_ffn(x2d, Lp["ln2_g"], Lp["ln2_b"],
                            Lp["ffn_w1"], Lp["ffn_b1"], Lp["ffn_w2"], Lp["ffn_b2"],
                            matmul_dtype=matmul_dtype)
    x = x2d.reshape(B, S, D)

    # late hfield fusion + decoder MLP
    hf = jnp.broadcast_to(h[:, None, :], (B, S, h.shape[-1]))
    y = jnp.concatenate([x, hf], axis=-1).reshape(B * S, D + h.shape[-1])
    n_dec = len(params["decoder"])
    for i, (w, b) in enumerate(params["decoder"]):
        y = pallas_linear(y, w, b, activation="relu" if i < n_dec - 1 else None,
                          matmul_dtype=matmul_dtype)
    # batch-first layout makes torch's permute(1,0,2).reshape(B,-1) a plain reshape
    return y.reshape(B, S * y.shape[-1])


def ref_forward(params, obs, obs_mask, hfield, *, nhead):
    S, B, L = obs.shape
    D = params["limb_embed_w"].shape[1]
    hd = D // nhead

    def ln(v, g, b, eps=1e-5):
        mu = jnp.mean(v, -1, keepdims=True)
        vc = v - mu
        var = jnp.mean(vc * vc, -1, keepdims=True)
        return vc * lax.rsqrt(var + eps) * g + b

    x = (obs @ params["limb_embed_w"] + params["limb_embed_b"]) * math.sqrt(D)  # (S,B,D)
    h = hfield
    for w, b in params["hfield"]:
        h = jnp.maximum(h @ w + b, 0.0)
    hf = jnp.broadcast_to(h[None], (S, B, h.shape[-1]))
    x = x + params["pe"]
    mask = obs_mask.astype(jnp.float32)

    for Lp in params["layers"]:
        xn = ln(x, Lp["ln1_g"], Lp["ln1_b"])
        qkv = xn @ Lp["in_proj_w"] + Lp["in_proj_b"]
        q, k, v = qkv[..., :D], qkv[..., D:2 * D], qkv[..., 2 * D:]

        def split(t):   # (S,B,D) -> (B,H,S,hd)
            return t.reshape(S, B, nhead, hd).transpose(1, 2, 0, 3)

        q, k, v = split(q), split(k), split(v)
        s = jnp.einsum("bhqd,bhkd->bhqk", q, k) / math.sqrt(hd)
        s = s - mask[:, None, None, :] * 1e30
        s = s - jnp.max(s, -1, keepdims=True)
        p = jnp.exp(s)
        p = p / jnp.sum(p, -1, keepdims=True)
        a = jnp.einsum("bhqk,bhkd->bhqd", p, v)
        a = a.transpose(2, 0, 1, 3).reshape(S, B, D)
        x = x + (a @ Lp["out_proj_w"] + Lp["out_proj_b"])
        xn = ln(x, Lp["ln2_g"], Lp["ln2_b"])
        x = x + (jnp.maximum(xn @ Lp["ffn_w1"] + Lp["ffn_b1"], 0.0)
                 @ Lp["ffn_w2"] + Lp["ffn_b2"])

    y = jnp.concatenate([x, hf], axis=-1)
    n_dec = len(params["decoder"])
    for i, (w, b) in enumerate(params["decoder"]):
        y = y @ w + b
        if i < n_dec - 1:
            y = jnp.maximum(y, 0.0)
    return y.transpose(1, 0, 2).reshape(B, -1)


# ----------------------------------------------------------------------------
if __name__ == "__main__":
    jax.config.update("jax_default_matmul_precision", "highest")  # tight reference compare

    # small config (cfg.MODEL.* stand-ins)
    S, B = 8, 2                 # MAX_LIMBS, batch
    LIMB_OBS = 16               # per-limb proprioceptive dim
    D = 32                      # LIMB_EMBED_SIZE
    NHEAD = 2
    DFF = 64                    # DIM_FEEDFORWARD
    NLAYERS = 2
    HFIELD_DIM = 16
    EXT_HIDDEN = (32,)          # EXT_HIDDEN_DIMS
    DECODER_DIMS = (32,)
    OUT_DIM = 2                 # decoder_out_dim

    key = jax.random.PRNGKey(0)
    k_par, k_obs, k_h = jax.random.split(key, 3)

    params = init_params(k_par, seq_len=S, limb_obs=LIMB_OBS, d_model=D, nhead=NHEAD,
                         dff=DFF, nlayers=NLAYERS, hfield_dim=HFIELD_DIM,
                         ext_hidden=EXT_HIDDEN, decoder_dims=DECODER_DIMS, out_dim=OUT_DIM)

    obs = jax.random.normal(k_obs, (S, B, LIMB_OBS), jnp.float32)
    hfield = jax.random.normal(k_h, (B, HFIELD_DIM), jnp.float32)
    obs_mask = jnp.zeros((B, S), dtype=bool).at[:, -2:].set(True)   # last 2 limbs padded

    # eval-mode forward through the Pallas kernels (f32 matmuls for the correctness check;
    # pass matmul_dtype=jnp.bfloat16 on v6e/v7x for MXU-native throughput)
    out = transformer_forward(params, obs, obs_mask, hfield, nhead=NHEAD,
                              matmul_dtype=jnp.float32)
    out = jax.block_until_ready(out)
    assert out.shape == (B, S * OUT_DIM)
    assert bool(jnp.all(jnp.isfinite(out)))

    # pure-JAX reference of the same forward
    ref = ref_forward(params, obs, obs_mask, hfield, nhead=NHEAD)
    max_err = float(jnp.max(jnp.abs(out - ref)))
    assert max_err < 2e-3, f"mismatch vs pure-JAX reference: {max_err}"

    print("KERNEL_OK")
</pallas_src>

<mosaic_0001>
module attributes {stable_mosaic.version = 11 : i64} {
  func.func @_embed_pe_kernel(%arg0: i32, %arg1: memref<1x8x16xf32, #tpu.memory_space<vmem>>, %arg2: memref<16x32xf32, #tpu.memory_space<vmem>>, %arg3: memref<1x32xf32, #tpu.memory_space<vmem>>, %arg4: memref<1x8x32xf32, #tpu.memory_space<vmem>>, %arg5: memref<1x8x32xf32, #tpu.memory_space<vmem>>) attributes {dimension_semantics = [#tpu.dimension_semantics<parallel>], iteration_bounds = array<i64: 2>, scalar_prefetch = 0 : i64, scratch_operands = 0 : i64, tpu.core_type = #tpu.core_type<tc>, window_params = [{transform_indices = @transform_0, window_bounds = array<i64: 1, 8, 16>}, {pipeline_mode = #tpu.pipeline_mode<synchronous>, transform_indices = @transform_1, window_bounds = array<i64: 16, 32>}, {pipeline_mode = #tpu.pipeline_mode<synchronous>, transform_indices = @transform_2, window_bounds = array<i64: 1, 32>}, {pipeline_mode = #tpu.pipeline_mode<synchronous>, transform_indices = @transform_3, window_bounds = array<i64: 1, 8, 32>}, {transform_indices = @transform_4, window_bounds = array<i64: 1, 8, 32>}]} {
    %c0 = arith.constant 0 : index
    %c0_0 = arith.constant 0 : index
    %c0_1 = arith.constant 0 : index
    %0 = vector.load %arg1[%c0, %c0_0, %c0_1] : memref<1x8x16xf32, #tpu.memory_space<vmem>>, vector<1x8x16xf32>
    %1 = vector.shape_cast %0 : vector<1x8x16xf32> to vector<8x16xf32>
    %c0_2 = arith.constant 0 : index
    %c0_3 = arith.constant 0 : index
    %2 = vector.load %arg2[%c0_2, %c0_3] : memref<16x32xf32, #tpu.memory_space<vmem>>, vector<16x32xf32>
    %cst = arith.constant dense<0.000000e+00> : vector<8x32xf32>
    %3 = tpu.matmul %1, %2, %cst {dimension_numbers = #tpu.dot_dimension_numbers<[1], [0], [0], [1], [0, 0, 1, 1], [], []>, precision = #tpu.contract_precision<fp32>} : vector<8x16xf32>, vector<16x32xf32>, vector<8x32xf32> -> vector<8x32xf32>
    %c0_4 = arith.constant 0 : index
    %c0_5 = arith.constant 0 : index
    %4 = vector.load %arg3[%c0_4, %c0_5] : memref<1x32xf32, #tpu.memory_space<vmem>>, vector<1x32xf32>
    %5 = vector.broadcast %4 : vector<1x32xf32> to vector<8x32xf32>
    %6 = arith.addf %3, %5 : vector<8x32xf32>
    %cst_6 = arith.constant 5.65685415 : f32
    %7 = vector.broadcast %cst_6 : f32 to vector<8x32xf32>
    %8 = arith.mulf %6, %7 : vector<8x32xf32>
    %9 = vector.shape_cast %8 : vector<8x32xf32> to vector<1x8x32xf32>
    %c0_7 = arith.constant 0 : index
    %c0_8 = arith.constant 0 : index
    %c0_9 = arith.constant 0 : index
    %10 = vector.load %arg4[%c0_7, %c0_8, %c0_9] : memref<1x8x32xf32, #tpu.memory_space<vmem>>, vector<1x8x32xf32>
    %11 = arith.addf %9, %10 : vector<1x8x32xf32>
    %c0_10 = arith.constant 0 : index
    %c0_11 = arith.constant 0 : index
    %c0_12 = arith.constant 0 : index
    %12 = vector.load %arg5[%c0_10, %c0_11, %c0_12] : memref<1x8x32xf32, #tpu.memory_space<vmem>>, vector<1x8x32xf32>
    tpu.vector_store %arg5[%c0_10, %c0_11, %c0_12], %11 {strides = array<i32>} : memref<1x8x32xf32, #tpu.memory_space<vmem>>, vector<1x8x32xf32>,
    return
  }
  func.func @transform_0(%arg0: i32) -> (i32, i32, i32) {
    %c0_i32 = arith.constant 0 : i32
    %c0_i32_0 = arith.constant 0 : i32
    %c0_i32_1 = arith.constant 0 : i32
    return %arg0, %c0_i32, %c0_i32_0 : i32, i32, i32
  }
  func.func @transform_1(%arg0: i32) -> (i32, i32) {
    %c0_i32 = arith.constant 0 : i32
    %c0_i32_0 = arith.constant 0 : i32
    %c0_i32_1 = arith.constant 0 : i32
    return %c0_i32, %c0_i32_0 : i32, i32
  }
  func.func @transform_2(%arg0: i32) -> (i32, i32) {
    %c0_i32 = arith.constant 0 : i32
    %c0_i32_0 = arith.constant 0 : i32
    %c0_i32_1 = arith.constant 0 : i32
    return %c0_i32, %c0_i32_0 : i32, i32
  }
  func.func @transform_3(%arg0: i32) -> (i32, i32, i32) {
    %c0_i32 = arith.constant 0 : i32
    %c0_i32_0 = arith.constant 0 : i32
    %c0_i32_1 = arith.constant 0 : i32
    %c0_i32_2 = arith.constant 0 : i32
    return %c0_i32, %c0_i32_0, %c0_i32_1 : i32, i32, i32
  }
  func.func @transform_4(%arg0: i32) -> (i32, i32, i32) {
    %c0_i32 = arith.constant 0 : i32
    %c0_i32_0 = arith.constant 0 : i32
    %c0_i32_1 = arith.constant 0 : i32
    return %arg0, %c0_i32, %c0_i32_0 : i32, i32, i32
  }
}

</mosaic_0001>

<llo_original>
// kernel: tpu_custom_call.1
$region0: #{tpu_custom_call.1}
  #allocation0 [shape = 'u32[]', space=smem, size = 0x4, offset = 0x4, fixed_abs, tag = 'smem constant byte address 0x4 - core index']
  #allocation1 [shape = 'u32[144,128]{1,0:T(1,128)}', space=vmem, size = 0x12000, scoped, tag = 'internal scratch']
  %s0 = inlined_call_operand.hbm [shape: f32[2,8,16], index: 0, kind: input, shape index: {}]
  %s1 = inlined_call_operand.hbm [shape: f32[16,32], index: 1, kind: input, shape index: {}]
  %s2 = inlined_call_operand.vmem [shape: f32[1,32], index: 2, kind: input, shape index: {}]
  %s3 = inlined_call_operand.vmem [shape: f32[1,8,32], index: 3, kind: input, shape index: {}]
  %s4 = inlined_call_operand.hbm [shape: f32[2,8,32], index: 4, kind: output, shape index: {}]
  %s5 = sld [smem:[#allocation0]]
  $region57: #{tpu_custom_call.1} parent=0
    _
  %s7 = ssub.s32 1, %s5
  %s8 = scalar_select 0, %s7, %s5
  $region1: #{tpu_custom_call.1} parent=0
    #allocation2 [shape = 'u8[8192]{0}', space=vmem, size = 0x2000, scoped, tag = 'input window, operand 0']
    #allocation3 [shape = 's32[2]{0}', space=sflag, size = 0x8, scoped, tag = 'scoped memory for tpu_custom_call.1']
    #allocation4 [shape = 's32[2]{0}', space=sflag, size = 0x8, scoped, tag = 'scoped memory for tpu_custom_call.1']
    #allocation5 [shape = 'u8[8192]{0}', space=vmem, size = 0x2000, scoped, tag = 'input window, operand 1, single buffered']
    #allocation6 [shape = 's32[1]{0}', space=sflag, size = 0x4, scoped, tag = 'scoped memory for tpu_custom_call.1']
    #allocation7 [shape = 'u8[8192]{0}', space=vmem, size = 0x2000, scoped, tag = 'output window, operand 0']
    %9 = vsyncpa [#allocation3], 0
    %s10 = scalar_lea.sflag [#allocation3], 1
    %11 = vsyncpa %s10, 0
    %12 = vsyncpa [#allocation6], 0
    %13 = vsyncpa [#allocation4], 0
    %s14 = scalar_lea.sflag [#allocation4], 1
    %15 = vsyncpa %s14, 0
    loop: start=0, step=1, limit=4
    $region2: #{tpu_custom_call.1} parent=1 // loop_pre_header
      _
    $region3: #{tpu_custom_call.1} parent=1 // loop_header
      %s17 = sphi 0, %s21
      %p18 = scmp.ge.s32.totalorder %s17, 4
      %s27 = sphi 0, %s29
      %s30 = sphi 0, %s27
      %s31 = sphi 0, %s30
      %s47 = sphi 0, %s31
      %s51 = sphi 0, %s51
      %s53 = sphi 0, %s51
      %s54 = sphi 0, %s53
      %s68 = sphi 0, %s54
      %s72 = sphi 0, %s72
      %s74 = sphi 0, %s72
      %s75 = sphi 0, %s74
      %s89 = sphi 0, %s75
      %s93 = sphi 0, %s93
      %s95 = sphi 0, %s93
      %s96 = sphi 0, %s95
      %s110 = sphi 0, %s96
      %s116 = sphi 0, %s118
      %s119 = sphi 0, %s116
      %s120 = sphi 0, %s119
      %s136 = sphi 0, %s120
    $region4: #{tpu_custom_call.1} parent=1 // loop_header_branch
      %20 = sbr.rel (%p18) target = $region8
    $region5: #{tpu_custom_call.1} parent=1 // loop_body
      %s22 = ssub.s32 %s17, 1
      %s23 = ssub.s32 %s17, 2
      %s24 = sadd.s32 %s17, 1
      %s25 = ssub.s32 %s17, %s24
      %p26 = scmp.eq.s32.totalorder %s25, 0
      %s28 = sadd.s32 %s27, 1
      %s29 = scalar_select %p26, %s27, %s28
      %p32 = pneg %p26
      %p33 = scmp.eq.s32.totalorder %s17, 1
      %p34 = por %p32, %p33
      %p35 = scmp.ne.s32.totalorder %s27, %s30
      %p36 = scmp.eq.s32.totalorder %s17, 0
      %p37 = por %p35, %p36
      %p38 = scmp.ne.s32.totalorder %s27, %s30
      %p39 = scmp.eq.s32.totalorder %s22, 1
      %p40 = por %p38, %p39
      %p41 = scmp.ne.s32.totalorder %s30, %s31
      %p42 = scmp.eq.s32.totalorder %s22, 0
      %p43 = por %p41, %p42
      %p44 = scmp.ne.s32.totalorder %s30, %s31
      %p45 = scmp.eq.s32.totalorder %s23, 1
      %p46 = por %p44, %p45
      %p48 = scmp.ne.s32.totalorder %s31, %s47
      %p49 = scmp.eq.s32.totalorder %s23, 0
      %p50 = por %p48, %p49
      %s52 = sadd.s32 %s51, 1
      %p55 = scmp.eq.s32.totalorder %s17, 1
      %p56 = scmp.ne.s32.totalorder %s51, %s53
      %p57 = scmp.eq.s32.totalorder %s17, 0
      %p58 = por %p56, %p57
      %p59 = scmp.ne.s32.totalorder %s51, %s53
      %p60 = scmp.eq.s32.totalorder %s22, 1
      %p61 = por %p59, %p60
      %p62 = scmp.ne.s32.totalorder %s53, %s54
      %p63 = scmp.eq.s32.totalorder %s22, 0
      %p64 = por %p62, %p63
      %p65 = scmp.ne.s32.totalorder %s53, %s54
      %p66 = scmp.eq.s32.totalorder %s23, 1
      %p67 = por %p65, %p66
      %p69 = scmp.ne.s32.totalorder %s54, %s68
      %p70 = scmp.eq.s32.totalorder %s23, 0
      %p71 = por %p69, %p70
      %s73 = sadd.s32 %s72, 1
      %p76 = scmp.eq.s32.totalorder %s17, 1
      %p77 = scmp.ne.s32.totalorder %s72, %s74
      %p78 = scmp.eq.s32.totalorder %s17, 0
      %p79 = por %p77, %p78
      %p80 = scmp.ne.s32.totalorder %s72, %s74
      %p81 = scmp.eq.s32.totalorder %s22, 1
      %p82 = por %p80, %p81
      %p83 = scmp.ne.s32.totalorder %s74, %s75
      %p84 = scmp.eq.s32.totalorder %s22, 0
      %p85 = por %p83, %p84
      %p86 = scmp.ne.s32.totalorder %s74, %s75
      %p87 = scmp.eq.s32.totalorder %s23, 1
      %p88 = por %p86, %p87
      %p90 = scmp.ne.s32.totalorder %s75, %s89
      %p91 = scmp.eq.s32.totalorder %s23, 0
      %p92 = por %p90, %p91
      %s94 = sadd.s32 %s93, 1
      %p97 = scmp.eq.s32.totalorder %s17, 1
      %p98 = scmp.ne.s32.totalorder %s93, %s95
      %p99 = scmp.eq.s32.totalorder %s17, 0
      %p100 = por %p98, %p99
      %p101 = scmp.ne.s32.totalorder %s93, %s95
      %p102 = scmp.eq.s32.totalorder %s22, 1
      %p103 = por %p101, %p102
      %p104 = scmp.ne.s32.totalorder %s95, %s96
      %p105 = scmp.eq.s32.totalorder %s22, 0
      %p106 = por %p104, %p105
      %p107 = scmp.ne.s32.totalorder %s95, %s96
      %p108 = scmp.eq.s32.totalorder %s23, 1
      %p109 = por %p107, %p108
      %p111 = scmp.ne.s32.totalorder %s96, %s110
      %p112 = scmp.eq.s32.totalorder %s23, 0
      %p113 = por %p111, %p112
      %s114 = ssub.s32 %s17, %s24
      %p115 = scmp.eq.s32.totalorder %s114, 0
      %s117 = sadd.s32 %s116, 1
      %s118 = scalar_select %p115, %s116, %s117
      %p121 = pneg %p115
      %p122 = scmp.eq.s32.totalorder %s17, 1
      %p123 = por %p121, %p122
      %p124 = scmp.ne.s32.totalorder %s116, %s119
      %p125 = scmp.eq.s32.totalorder %s17, 0
      %p126 = por %p124, %p125
      %p127 = scmp.ne.s32.totalorder %s116, %s119
      %p128 = scmp.eq.s32.totalorder %s22, 1
      %p129 = por %p127, %p128
      %p130 = scmp.ne.s32.totalorder %s119, %s120
      %p131 = scmp.eq.s32.totalorder %s22, 0
      %p132 = por %p130, %p131
      %p133 = scmp.ne.s32.totalorder %s119, %s120
      %p134 = scmp.eq.s32.totalorder %s23, 1
      %p135 = por %p133, %p134
      %p137 = scmp.ne.s32.totalorder %s120, %s136
      %p138 = scmp.eq.s32.totalorder %s23, 0
      %p139 = por %p137, %p138
      %p140 = scmp.le.s32.totalorder 1, %s17
      %p141 = scmp.lt.s32.totalorder %s17, 3
      %p142 = pnand %p140, %p141
      %p143 = pneg %p142
      // Predicated region
      $region9: #{tpu_custom_call.1} parent=5 // pred_check
        _
      $region10: #{tpu_custom_call.1} parent=5 // pred_check_branch
        %145 = sbr.rel (%p142) target = $region12
      $region11: #{tpu_custom_call.1} parent=5 // pred_region
        %s146 = ssub.s32 %s17, 1
        // Predicated region
        $region13: #{tpu_custom_call.1} parent=11 // pred_check
          %p147 = pneg %p64
        $region14: #{tpu_custom_call.1} parent=11 // pred_check_branch
          %149 = sbr.rel (%p147) target = $region16
        $region15: #{tpu_custom_call.1} parent=11 // pred_region
          %s151 = ssub.s32 256, 256
          %152 = vsyncadd [#allocation6], %s151
          %s153 = sshll.u32 [#allocation5], 4
          %s154 = int_to_ptr.vmem [resolvable:$true] %s153
          %159 = dma.hbm_to_vmem [thread:$0]  %s1, 256, %s154, [#allocation6], 128, 128, 8
        $region16: #{tpu_custom_call.1} parent=11 // pred_fallthru
          _
        // Predicated region
        $region17: #{tpu_custom_call.1} parent=11 // pred_check
          %p160 = pneg %p85
        $region18: #{tpu_custom_call.1} parent=11 // pred_check_branch
          %162 = sbr.rel (%p160) target = $region20
        $region19: #{tpu_custom_call.1} parent=11 // pred_region
          _
        $region20: #{tpu_custom_call.1} parent=11 // pred_fallthru
          _
        // Predicated region
        $region21: #{tpu_custom_call.1} parent=11 // pred_check
          %p163 = pneg %p106
        $region22: #{tpu_custom_call.1} parent=11 // pred_check_branch
          %165 = sbr.rel (%p163) target = $region24
        $region23: #{tpu_custom_call.1} parent=11 // pred_region
          _
        $region24: #{tpu_custom_call.1} parent=11 // pred_fallthru
          _
      $region12: #{tpu_custom_call.1} parent=5 // pred_fallthru
        _
      %p166 = scmp.lt.s32.totalorder %s17, 2
      // Predicated region
      $region25: #{tpu_custom_call.1} parent=5 // pred_check
        %p167 = pneg %p166
      $region26: #{tpu_custom_call.1} parent=5 // pred_check_branch
        %169 = sbr.rel (%p167) target = $region28
      $region27: #{tpu_custom_call.1} parent=5 // pred_region
        // Predicated region
        $region29: #{tpu_custom_call.1} parent=27 // pred_check
          %p170 = pneg %p37
        $region30: #{tpu_custom_call.1} parent=27 // pred_check_branch
          %172 = sbr.rel (%p170) target = $region32
        $region31: #{tpu_custom_call.1} parent=27 // pred_region
          %s173 = sand.u32 %s27, 1
          %s174 = scalar_lea.sflag [#allocation3], %s173
          %s175 = sand.u32 %s27, 1
          %s176 = smul.addr %s175, 8
          %s177 = scalar_lea.vmem [#allocation2], %s176
          %s179 = ssub.s32 128, 128
          %180 = vsyncadd %s174, %s179
          %s181 = smul.addr %s17, 128
          %s182 = scalar_lea.hbm %s0, %s181
          %s184 = sshll.u32 %s177, 4
          %s185 = int_to_ptr.vmem [resolvable:$true] %s184
          %187 = dma.hbm_to_vmem [thread:$0]  %s182, 128, %s185, %s174
        $region32: #{tpu_custom_call.1} parent=27 // pred_fallthru
          _
      $region28: #{tpu_custom_call.1} parent=5 // pred_fallthru
        _
      %p188 = scmp.le.s32.totalorder 1, %s17
      %p189 = scmp.lt.s32.totalorder %s17, 3
      %p190 = pnand %p188, %p189
      %p191 = pneg %p190
      // Predicated region
      $region33: #{tpu_custom_call.1} parent=5 // pred_check
        _
      $region34: #{tpu_custom_call.1} parent=5 // pred_check_branch
        %193 = sbr.rel (%p190) target = $region36
      $region35: #{tpu_custom_call.1} parent=5 // pred_region
        %s194 = ssub.s32 %s17, 1
        %s195 = sand.u32 %s30, 1
        %s196 = scalar_lea.sflag [#allocation3], %s195
        %s197 = sand.u32 %s30, 1
        %s198 = smul.addr %s197, 8
        %s199 = scalar_lea.vmem [#allocation2], %s198
        // Predicated region
        $region37: #{tpu_custom_call.1} parent=35 // pred_check
          %p200 = pneg %p43
        $region38: #{tpu_custom_call.1} parent=35 // pred_check_branch
          %202 = sbr.rel (%p200) target = $region40
        $region39: #{tpu_custom_call.1} parent=35 // pred_region
          %203 = dma.done %s196, 128
        $region40: #{tpu_custom_call.1} parent=35 // pred_fallthru
          _
        // Predicated region
        $region41: #{tpu_custom_call.1} parent=35 // pred_check
          %p204 = pneg %p64
        $region42: #{tpu_custom_call.1} parent=35 // pred_check_branch
          %206 = sbr.rel (%p204) target = $region44
        $region43: #{tpu_custom_call.1} parent=35 // pred_region
          %207 = dma.done [#allocation6], 256
        $region44: #{tpu_custom_call.1} parent=35 // pred_fallthru
          _
        %s208 = sand.u32 %s30, 1
        %s209 = scalar_lea.sflag [#allocation3], %s208
        %s210 = sand.u32 %s30, 1
        %s211 = smul.addr %s210, 8
        %s212 = scalar_lea.vmem [#allocation2], %s211
        %p213 = pneg %p43
        %p214 = pneg %p40
        %p215 = pneg %p64
        %p216 = pneg %p61
        %p217 = pneg %p85
        %p218 = pneg %p82
        %p219 = pneg %p106
        %p220 = pneg %p103
        %p221 = pneg %p132
        %p222 = pneg %p129
        %s223 = sand.u32 %s119, 1
        %s224 = scalar_lea.sflag [#allocation4], %s223
        %s225 = sand.u32 %s119, 1
        %s226 = smul.addr %s225, 8
        %s227 = scalar_lea.vmem [#allocation7], %s226
        %v228 = vld [vmem:[%s199] sm:$0xff]
        %v229 = vld [vmem:[#allocation5] sm:$0xff]
        %v230 = vld [vmem:[#allocation5 + $0x8] sm:$0xff]
        %v231 = vld [vmem:[%s2] sm:$0x1]
        %v233 = vlaneseq
        %v234 = vshrl.u32 %v233, 7
        %v235 = vsub.s32 0, %v234
        %v236 = vrot.slane %v231, %v235
        %vm238 = vcmask 130048
        %v240 = vsel %vm238, %v228, 0
        %242 = vmatprep.subr.mxu0 0.0
        %v243 = vand.u32 %v229, 4294901760
        %244 = vmatpush1.msra.mxu0 %v243
        %245 = vmatprep.subr.mxu0 0.0
        %v246 = vand.u32 %v230, 4294901760
        %247 = vmatpush1.msra.mxu0 %v246
        %248 = vmatprep.subr.mxu0 0.0
        %249 = vmatpush1.msra.mxu0 0.0
        %250 = vmatprep.subr.mxu0 0.0
        %251 = vmatpush1.msra.mxu0 0.0
        %252 = vmatprep.subr.mxu0 0.0
        %253 = vmatpush1.msra.mxu0 0.0
        %254 = vmatprep.subr.mxu0 0.0
        %255 = vmatpush1.msra.mxu0 0.0
        %256 = vmatprep.subr.mxu0 0.0
        %257 = vmatpush1.msra.mxu0 0.0
        %258 = vmatprep.subr.mxu0 0.0
        %259 = vmatpush1.msra.mxu0 0.0
        %260 = vmatprep.subr.mxu0 0.0
        %261 = vmatpush1.msra.mxu0 0.0
        %262 = vmatprep.subr.mxu0 0.0
        %263 = vmatpush1.msra.mxu0 0.0
        %264 = vmatprep.subr.mxu0 0.0
        %265 = vmatpush1.msra.mxu0 0.0
        %266 = vmatprep.subr.mxu0 0.0
        %267 = vmatpush1.msra.mxu0 0.0
        %268 = vmatprep.subr.mxu0 0.0
        %269 = vmatpush1.msra.mxu0 0.0
        %270 = vmatprep.subr.mxu0 0.0
        %271 = vmatpush1.msra.mxu0 0.0
        %272 = vmatprep.subr.mxu0 0.0
        %273 = vmatpush1.msra.mxu0 0.0
        %274 = vmatprep.subr.mxu0 0.0
        %275 = vmatpush1.msra.mxu0 0.0
        %276 = vmatprep.subr.mxu0 0.0
        %277 = vmatpush1.msra.mxu0 0.0
        %278 = vmatprep.subr.mxu0 0.0
        %279 = vmatpush1.msra.mxu0 0.0
        %280 = vmatprep.subr.mxu0 0.0
        %281 = vmatpush1.msra.mxu0 0.0
        %282 = vmatprep.subr.mxu0 0.0
        %283 = vmatpush1.msra.mxu0 0.0
        %284 = vmatprep.subr.mxu0 0.0
        %285 = vmatpush1.msra.mxu0 0.0
        %286 = vmatprep.subr.mxu0 0.0
        %287 = vmatpush1.msra.mxu0 0.0
        %288 = vmatprep.subr.mxu0 0.0
        %289 = vmatpush1.msra.mxu0 0.0
        %290 = vmatprep.subr.mxu0 0.0
        %291 = vmatpush1.msra.mxu0 0.0
        %292 = vmatprep.subr.mxu0 0.0
        %293 = vmatpush1.msra.mxu0 0.0
        %294 = vmatprep.subr.mxu0 0.0
        %295 = vmatpush1.msra.mxu0 0.0
        %296 = vmatprep.subr.mxu0 0.0
        %297 = vmatpush1.msra.mxu0 0.0
        %298 = vmatprep.subr.mxu0 0.0
        %299 = vmatpush1.msra.mxu0 0.0
        %300 = vmatprep.subr.mxu0 0.0
        %301 = vmatpush1.msra.mxu0 0.0
        %302 = vmatprep.subr.mxu0 0.0
        %303 = vmatpush1.msra.mxu0 0.0
        %304 = vmatprep.subr.mxu0 0.0
        %305 = vmatpush1.msra.mxu0 0.0
        %306 = vmatprep.subr.mxu0 0.0
        %307 = vmatpush1.msra.mxu0 0.0
        %308 = vmatprep.mubr.f32.mxu0 0.0
        %v309 = vand.u32 %v240, 4294901760
        %v310 = vsub.f32 %v240, %v309
        %v311 = vand.u32 %v310, 4294901760
        %v312 = vsub.f32 %v310, %v311
        %v313 = vand.u32 %v312, 4294901760
        %314 = vmatmul.mubr.f32.gmra.mrb[0].mxu0 %v313
        %v315 = vpop.f32.mrb[0].mxu0
        %v316 = vadd.f32 %v236, %v315
        %v317 = vpop.f32.mrb[0].mxu0
        %318 = vdwg.mxu0
        %319 = vmatprep.subr.mxu0 0.0
        %v320 = vand.u32 %v229, 4294901760
        %v321 = vsub.f32 %v229, %v320
        %v322 = vand.u32 %v321, 4294901760
        %v323 = vsub.f32 %v321, %v322
        %v324 = vand.u32 %v323, 4294901760
        %325 = vmatpush1.msra.mxu0 %v324
        %326 = vmatprep.subr.mxu0 0.0
        %v327 = vand.u32 %v230, 4294901760
        %v328 = vsub.f32 %v230, %v327
        %v329 = vand.u32 %v328, 4294901760
        %v330 = vsub.f32 %v328, %v329
        %v331 = vand.u32 %v330, 4294901760
        %332 = vmatpush1.msra.mxu0 %v331
        %333 = vmatprep.subr.mxu0 0.0
        %334 = vmatpush1.msra.mxu0 0.0
        %335 = vmatprep.subr.mxu0 0.0
        %336 = vmatpush1.msra.mxu0 0.0
        %337 = vmatprep.subr.mxu0 0.0
        %338 = vmatpush1.msra.mxu0 0.0
        %339 = vmatprep.subr.mxu0 0.0
        %340 = vmatpush1.msra.mxu0 0.0
        %341 = vmatprep.subr.mxu0 0.0
        %342 = vmatpush1.msra.mxu0 0.0
        %343 = vmatprep.subr.mxu0 0.0
        %344 = vmatpush1.msra.mxu0 0.0
        %345 = vmatprep.subr.mxu0 0.0
        %346 = vmatpush1.msra.mxu0 0.0
        %347 = vmatprep.subr.mxu0 0.0
        %348 = vmatpush1.msra.mxu0 0.0
        %349 = vmatprep.subr.mxu0 0.0
        %350 = vmatpush1.msra.mxu0 0.0
        %351 = vmatprep.subr.mxu0 0.0
        %352 = vmatpush1.msra.mxu0 0.0
        %353 = vmatprep.subr.mxu0 0.0
        %354 = vmatpush1.msra.mxu0 0.0
        %355 = vmatprep.subr.mxu0 0.0
        %356 = vmatpush1.msra.mxu0 0.0
        %357 = vmatprep.subr.mxu0 0.0
        %358 = vmatpush1.msra.mxu0 0.0
        %359 = vmatprep.subr.mxu0 0.0
        %360 = vmatpush1.msra.mxu0 0.0
        %361 = vmatprep.subr.mxu0 0.0
        %362 = vmatpush1.msra.mxu0 0.0
        %363 = vmatprep.subr.mxu0 0.0
        %364 = vmatpush1.msra.mxu0 0.0
        %365 = vmatprep.subr.mxu0 0.0
        %366 = vmatpush1.msra.mxu0 0.0
        %367 = vmatprep.subr.mxu0 0.0
        %368 = vmatpush1.msra.mxu0 0.0
        %369 = vmatprep.subr.mxu0 0.0
        %370 = vmatpush1.msra.mxu0 0.0
        %371 = vmatprep.subr.mxu0 0.0
        %372 = vmatpush1.msra.mxu0 0.0
        %373 = vmatprep.subr.mxu0 0.0
        %374 = vmatpush1.msra.mxu0 0.0
        %375 = vmatprep.subr.mxu0 0.0
        %376 = vmatpush1.msra.mxu0 0.0
        %377 = vmatprep.subr.mxu0 0.0
        %378 = vmatpush1.msra.mxu0 0.0
        %379 = vmatprep.subr.mxu0 0.0
        %380 = vmatpush1.msra.mxu0 0.0
        %381 = vmatprep.subr.mxu0 0.0
        %382 = vmatpush1.msra.mxu0 0.0
        %383 = vmatprep.subr.mxu0 0.0
        %384 = vmatpush1.msra.mxu0 0.0
        %385 = vmatprep.subr.mxu0 0.0
        %386 = vmatpush1.msra.mxu0 0.0
        %387 = vmatprep.subr.mxu0 0.0
        %388 = vmatpush1.msra.mxu0 0.0
        %389 = vmatprep.subr.mxu0 0.0
        %390 = vmatpush1.msra.mxu0 0.0
        %391 = vmatprep.subr.mxu0 0.0
        %392 = vmatpush1.msra.mxu0 0.0
        %393 = vmatprep.mubr.f32.mxu0 0.0
        %v394 = vand.u32 %v240, 4294901760
        %395 = vmatmul.mubr.f32.gmra.mrb[0].mxu0 %v394
        %v396 = vpop.f32.mrb[0].mxu0
        %v397 = vadd.f32 %v316, %v396
        %v398 = vpop.f32.mrb[0].mxu0
        %399 = vdwg.mxu0
        %400 = vmatprep.subr.mxu0 0.0
        %v401 = vand.u32 %v229, 4294901760
        %v402 = vsub.f32 %v229, %v401
        %403 = vmatpush1.msra.mxu0 %v402
        %404 = vmatprep.subr.mxu0 0.0
        %v405 = vand.u32 %v230, 4294901760
        %v406 = vsub.f32 %v230, %v405
        %407 = vmatpush1.msra.mxu0 %v406
        %408 = vmatprep.subr.mxu0 0.0
        %409 = vmatpush1.msra.mxu0 0.0
        %410 = vmatprep.subr.mxu0 0.0
        %411 = vmatpush1.msra.mxu0 0.0
        %412 = vmatprep.subr.mxu0 0.0
        %413 = vmatpush1.msra.mxu0 0.0
        %414 = vmatprep.subr.mxu0 0.0
        %415 = vmatpush1.msra.mxu0 0.0
        %416 = vmatprep.subr.mxu0 0.0
        %417 = vmatpush1.msra.mxu0 0.0
        %418 = vmatprep.subr.mxu0 0.0
        %419 = vmatpush1.msra.mxu0 0.0
        %420 = vmatprep.subr.mxu0 0.0
        %421 = vmatpush1.msra.mxu0 0.0
        %422 = vmatprep.subr.mxu0 0.0
        %423 = vmatpush1.msra.mxu0 0.0
        %424 = vmatprep.subr.mxu0 0.0
        %425 = vmatpush1.msra.mxu0 0.0
        %426 = vmatprep.subr.mxu0 0.0
        %427 = vmatpush1.msra.mxu0 0.0
        %428 = vmatprep.subr.mxu0 0.0
        %429 = vmatpush1.msra.mxu0 0.0
        %430 = vmatprep.subr.mxu0 0.0
        %431 = vmatpush1.msra.mxu0 0.0
        %432 = vmatprep.subr.mxu0 0.0
        %433 = vmatpush1.msra.mxu0 0.0
        %434 = vmatprep.subr.mxu0 0.0
        %435 = vmatpush1.msra.mxu0 0.0
        %436 = vmatprep.subr.mxu0 0.0
        %437 = vmatpush1.msra.mxu0 0.0
        %438 = vmatprep.subr.mxu0 0.0
        %439 = vmatpush1.msra.mxu0 0.0
        %440 = vmatprep.subr.mxu0 0.0
        %441 = vmatpush1.msra.mxu0 0.0
        %442 = vmatprep.subr.mxu0 0.0
        %443 = vmatpush1.msra.mxu0 0.0
        %444 = vmatprep.subr.mxu0 0.0
        %445 = vmatpush1.msra.mxu0 0.0
        %446 = vmatprep.subr.mxu0 0.0
        %447 = vmatpush1.msra.mxu0 0.0
        %448 = vmatprep.subr.mxu0 0.0
        %449 = vmatpush1.msra.mxu0 0.0
        %450 = vmatprep.subr.mxu0 0.0
        %451 = vmatpush1.msra.mxu0 0.0
        %452 = vmatprep.subr.mxu0 0.0
        %453 = vmatpush1.msra.mxu0 0.0
        %454 = vmatprep.subr.mxu0 0.0
        %455 = vmatpush1.msra.mxu0 0.0
        %456 = vmatprep.subr.mxu0 0.0
        %457 = vmatpush1.msra.mxu0 0.0
        %458 = vmatprep.subr.mxu0 0.0
        %459 = vmatpush1.msra.mxu0 0.0
        %460 = vmatprep.subr.mxu0 0.0
        %461 = vmatpush1.msra.mxu0 0.0
        %462 = vmatprep.subr.mxu0 0.0
        %463 = vmatpush1.msra.mxu0 0.0
        %464 = vmatprep.subr.mxu0 0.0
        %465 = vmatpush1.msra.mxu0 0.0
        %466 = vmatprep.subr.mxu0 0.0
        %467 = vmatpush1.msra.mxu0 0.0
        %468 = vmatprep.mubr.f32.mxu0 0.0
        %v469 = vand.u32 %v240, 4294901760
        %v470 = vsub.f32 %v240, %v469
        %471 = vmatmul.mubr.f32.gmra.mrb[0].mxu0 %v470
        %v472 = vpop.f32.mrb[0].mxu0
        %v473 = vadd.f32 %v397, %v472
        %v474 = vpop.f32.mrb[0].mxu0
        %475 = vdwg.mxu0
        %476 = vmatprep.subr.mxu0 0.0
        %v477 = vand.u32 %v229, 4294901760
        %478 = vmatpush1.msra.mxu0 %v477
        %479 = vmatprep.subr.mxu0 0.0
        %v480 = vand.u32 %v230, 4294901760
        %481 = vmatpush1.msra.mxu0 %v480
        %482 = vmatprep.subr.mxu0 0.0
        %483 = vmatpush1.msra.mxu0 0.0
        %484 = vmatprep.subr.mxu0 0.0
        %485 = vmatpush1.msra.mxu0 0.0
        %486 = vmatprep.subr.mxu0 0.0
        %487 = vmatpush1.msra.mxu0 0.0
        %488 = vmatprep.subr.mxu0 0.0
        %489 = vmatpush1.msra.mxu0 0.0
        %490 = vmatprep.subr.mxu0 0.0
        %491 = vmatpush1.msra.mxu0 0.0
        %492 = vmatprep.subr.mxu0 0.0
        %493 = vmatpush1.msra.mxu0 0.0
        %494 = vmatprep.subr.mxu0 0.0
        %495 = vmatpush1.msra.mxu0 0.0
        %496 = vmatprep.subr.mxu0 0.0
        %497 = vmatpush1.msra.mxu0 0.0
        %498 = vmatprep.subr.mxu0 0.0
        %499 = vmatpush1.msra.mxu0 0.0
        %500 = vmatprep.subr.mxu0 0.0
        %501 = vmatpush1.msra.mxu0 0.0
        %502 = vmatprep.subr.mxu0 0.0
        %503 = vmatpush1.msra.mxu0 0.0
        %504 = vmatprep.subr.mxu0 0.0
        %505 = vmatpush1.msra.mxu0 0.0
        %506 = vmatprep.subr.mxu0 0.0
        %507 = vmatpush1.msra.mxu0 0.0
        %508 = vmatprep.subr.mxu0 0.0
        %509 = vmatpush1.msra.mxu0 0.0
        %510 = vmatprep.subr.mxu0 0.0
        %511 = vmatpush1.msra.mxu0 0.0
        %512 = vmatprep.subr.mxu0 0.0
        %513 = vmatpush1.msra.mxu0 0.0
        %514 = vmatprep.subr.mxu0 0.0
        %515 = vmatpush1.msra.mxu0 0.0
        %516 = vmatprep.subr.mxu0 0.0
        %517 = vmatpush1.msra.mxu0 0.0
        %518 = vmatprep.subr.mxu0 0.0
        %519 = vmatpush1.msra.mxu0 0.0
        %520 = vmatprep.subr.mxu0 0.0
        %521 = vmatpush1.msra.mxu0 0.0
        %522 = vmatprep.subr.mxu0 0.0
        %523 = vmatpush1.msra.mxu0 0.0
        %524 = vmatprep.subr.mxu0 0.0
        %525 = vmatpush1.msra.mxu0 0.0
        %526 = vmatprep.subr.mxu0 0.0
        %527 = vmatpush1.msra.mxu0 0.0
        %528 = vmatprep.subr.mxu0 0.0
        %529 = vmatpush1.msra.mxu0 0.0
        %530 = vmatprep.subr.mxu0 0.0
        %531 = vmatpush1.msra.mxu0 0.0
        %532 = vmatprep.subr.mxu0 0.0
        %533 = vmatpush1.msra.mxu0 0.0
        %534 = vmatprep.subr.mxu0 0.0
        %535 = vmatpush1.msra.mxu0 0.0
        %536 = vmatprep.subr.mxu0 0.0
        %537 = vmatpush1.msra.mxu0 0.0
        %538 = vmatprep.subr.mxu0 0.0
        %539 = vmatpush1.msra.mxu0 0.0
        %540 = vmatprep.subr.mxu0 0.0
        %541 = vmatpush1.msra.mxu0 0.0
        %542 = vmatprep.mubr.f32.mxu0 0.0
        %v543 = vand.u32 %v240, 4294901760
        %v544 = vsub.f32 %v240, %v543
        %v545 = vand.u32 %v544, 4294901760
        %546 = vmatmul.mubr.f32.gmra.mrb[0].mxu0 %v545
        %v547 = vpop.f32.mrb[0].mxu0
        %v548 = vadd.f32 %v473, %v547
        %v549 = vpop.f32.mrb[0].mxu0
        %550 = vdwg.mxu0
        %551 = vmatprep.subr.mxu0 0.0
        %v552 = vand.u32 %v229, 4294901760
        %v553 = vsub.f32 %v229, %v552
        %v554 = vand.u32 %v553, 4294901760
        %555 = vmatpush1.msra.mxu0 %v554
        %556 = vmatprep.subr.mxu0 0.0
        %v557 = vand.u32 %v230, 4294901760
        %v558 = vsub.f32 %v230, %v557
        %v559 = vand.u32 %v558, 4294901760
        %560 = vmatpush1.msra.mxu0 %v559
        %561 = vmatprep.subr.mxu0 0.0
        %562 = vmatpush1.msra.mxu0 0.0
        %563 = vmatprep.subr.mxu0 0.0
        %564 = vmatpush1.msra.mxu0 0.0
        %565 = vmatprep.subr.mxu0 0.0
        %566 = vmatpush1.msra.mxu0 0.0
        %567 = vmatprep.subr.mxu0 0.0
        %568 = vmatpush1.msra.mxu0 0.0
        %569 = vmatprep.subr.mxu0 0.0
        %570 = vmatpush1.msra.mxu0 0.0
        %571 = vmatprep.subr.mxu0 0.0
        %572 = vmatpush1.msra.mxu0 0.0
        %573 = vmatprep.subr.mxu0 0.0
        %574 = vmatpush1.msra.mxu0 0.0
        %575 = vmatprep.subr.mxu0 0.0
        %576 = vmatpush1.msra.mxu0 0.0
        %577 = vmatprep.subr.mxu0 0.0
        %578 = vmatpush1.msra.mxu0 0.0
        %579 = vmatprep.subr.mxu0 0.0
        %580 = vmatpush1.msra.mxu0 0.0
        %581 = vmatprep.subr.mxu0 0.0
        %582 = vmatpush1.msra.mxu0 0.0
        %583 = vmatprep.subr.mxu0 0.0
        %584 = vmatpush1.msra.mxu0 0.0
        %585 = vmatprep.subr.mxu0 0.0
        %586 = vmatpush1.msra.mxu0 0.0
        %587 = vmatprep.subr.mxu0 0.0
        %588 = vmatpush1.msra.mxu0 0.0
        %589 = vmatprep.subr.mxu0 0.0
        %590 = vmatpush1.msra.mxu0 0.0
        %591 = vmatprep.subr.mxu0 0.0
        %592 = vmatpush1.msra.mxu0 0.0
        %593 = vmatprep.subr.mxu0 0.0
        %594 = vmatpush1.msra.mxu0 0.0
        %595 = vmatprep.subr.mxu0 0.0
        %596 = vmatpush1.msra.mxu0 0.0
        %597 = vmatprep.subr.mxu0 0.0
        %598 = vmatpush1.msra.mxu0 0.0
        %599 = vmatprep.subr.mxu0 0.0
        %600 = vmatpush1.msra.mxu0 0.0
        %601 = vmatprep.subr.mxu0 0.0
        %602 = vmatpush1.msra.mxu0 0.0
        %603 = vmatprep.subr.mxu0 0.0
        %604 = vmatpush1.msra.mxu0 0.0
        %605 = vmatprep.subr.mxu0 0.0
        %606 = vmatpush1.msra.mxu0 0.0
        %607 = vmatprep.subr.mxu0 0.0
        %608 = vmatpush1.msra.mxu0 0.0
        %609 = vmatprep.subr.mxu0 0.0
        %610 = vmatpush1.msra.mxu0 0.0
        %611 = vmatprep.subr.mxu0 0.0
        %612 = vmatpush1.msra.mxu0 0.0
        %613 = vmatprep.subr.mxu0 0.0
        %614 = vmatpush1.msra.mxu0 0.0
        %615 = vmatprep.subr.mxu0 0.0
        %616 = vmatpush1.msra.mxu0 0.0
        %617 = vmatprep.subr.mxu0 0.0
        %618 = vmatpush1.msra.mxu0 0.0
        %619 = vmatprep.subr.mxu0 0.0
        %620 = vmatpush1.msra.mxu0 0.0
        %621 = vmatprep.mubr.f32.mxu0 0.0
        %v622 = vand.u32 %v240, 4294901760
        %623 = vmatmul.mubr.f32.gmra.mrb[0].mxu0 %v622
        %v624 = vpop.f32.mrb[0].mxu0
        %v625 = vadd.f32 %v548, %v624
        %v626 = vpop.f32.mrb[0].mxu0
        %627 = vdwg.mxu0
        %628 = vmatprep.subr.mxu0 0.0
        %v629 = vand.u32 %v229, 4294901760
        %630 = vmatpush1.msra.mxu0 %v629
        %631 = vmatprep.subr.mxu0 0.0
        %v632 = vand.u32 %v230, 4294901760
        %633 = vmatpush1.msra.mxu0 %v632
        %634 = vmatprep.subr.mxu0 0.0
        %635 = vmatpush1.msra.mxu0 0.0
        %636 = vmatprep.subr.mxu0 0.0
        %637 = vmatpush1.msra.mxu0 0.0
        %638 = vmatprep.subr.mxu0 0.0
        %639 = vmatpush1.msra.mxu0 0.0
        %640 = vmatprep.subr.mxu0 0.0
        %641 = vmatpush1.msra.mxu0 0.0
        %642 = vmatprep.subr.mxu0 0.0
        %643 = vmatpush1.msra.mxu0 0.0
        %644 = vmatprep.subr.mxu0 0.0
        %645 = vmatpush1.msra.mxu0 0.0
        %646 = vmatprep.subr.mxu0 0.0
        %647 = vmatpush1.msra.mxu0 0.0
        %648 = vmatprep.subr.mxu0 0.0
        %649 = vmatpush1.msra.mxu0 0.0
        %650 = vmatprep.subr.mxu0 0.0
        %651 = vmatpush1.msra.mxu0 0.0
        %652 = vmatprep.subr.mxu0 0.0
        %653 = vmatpush1.msra.mxu0 0.0
        %654 = vmatprep.subr.mxu0 0.0
        %655 = vmatpush1.msra.mxu0 0.0
        %656 = vmatprep.subr.mxu0 0.0
        %657 = vmatpush1.msra.mxu0 0.0
        %658 = vmatprep.subr.mxu0 0.0
        %659 = vmatpush1.msra.mxu0 0.0
        %660 = vmatprep.subr.mxu0 0.0
        %661 = vmatpush1.msra.mxu0 0.0
        %662 = vmatprep.subr.mxu0 0.0
        %663 = vmatpush1.msra.mxu0 0.0
        %664 = vmatprep.subr.mxu0 0.0
        %665 = vmatpush1.msra.mxu0 0.0
        %666 = vmatprep.subr.mxu0 0.0
        %667 = vmatpush1.msra.mxu0 0.0
        %668 = vmatprep.subr.mxu0 0.0
        %669 = vmatpush1.msra.mxu0 0.0
        %670 = vmatprep.subr.mxu0 0.0
        %671 = vmatpush1.msra.mxu0 0.0
        %672 = vmatprep.subr.mxu0 0.0
        %673 = vmatpush1.msra.mxu0 0.0
        %674 = vmatprep.subr.mxu0 0.0
        %675 = vmatpush1.msra.mxu0 0.0
        %676 = vmatprep.subr.mxu0 0.0
        %677 = vmatpush1.msra.mxu0 0.0
        %678 = vmatprep.subr.mxu0 0.0
        %679 = vmatpush1.msra.mxu0 0.0
        %680 = vmatprep.subr.mxu0 0.0
        %681 = vmatpush1.msra.mxu0 0.0
        %682 = vmatprep.subr.mxu0 0.0
        %683 = vmatpush1.msra.mxu0 0.0
        %684 = vmatprep.subr.mxu0 0.0
        %685 = vmatpush1.msra.mxu0 0.0
        %686 = vmatprep.subr.mxu0 0.0
        %687 = vmatpush1.msra.mxu0 0.0
        %688 = vmatprep.subr.mxu0 0.0
        %689 = vmatpush1.msra.mxu0 0.0
        %690 = vmatprep.subr.mxu0 0.0
        %691 = vmatpush1.msra.mxu0 0.0
        %692 = vmatprep.subr.mxu0 0.0
        %693 = vmatpush1.msra.mxu0 0.0
        %694 = vmatprep.mubr.f32.mxu0 0.0
        %v695 = vand.u32 %v240, 4294901760
        %696 = vmatmul.mubr.f32.gmra.mrb[0].mxu0 %v695
        %v697 = vpop.f32.mrb[0].mxu0
        %v698 = vadd.f32 %v625, %v697
        %v699 = vpop.f32.mrb[0].mxu0
        %700 = vdwg.mxu0
        %v701 = vmul.f32 %v698, 5.656854
        %v702 = vld [vmem:[%s3] sm:$0xff]
        %v703 = vadd.f32 %v701, %v702
        %vm704 = vcmask 261120
        %705 = vst.msk [vmem:[%s227] sm:$0xff] %vm704, %v703
        %s706 = sand.u32 %s119, 1
        %s707 = scalar_lea.sflag [#allocation4], %s706
        %s708 = sand.u32 %s119, 1
        %s709 = smul.addr %s708, 8
        %s710 = scalar_lea.vmem [#allocation7], %s709
        // Predicated region
        $region45: #{tpu_custom_call.1} parent=35 // pred_check
          %p711 = pneg %p129
        $region46: #{tpu_custom_call.1} parent=35 // pred_check_branch
          %713 = sbr.rel (%p711) target = $region48
        $region47: #{tpu_custom_call.1} parent=35 // pred_region
          %s715 = ssub.s32 128, 128
          %716 = vsyncadd %s707, %s715
          %s717 = smul.addr %s22, 128
          %s718 = scalar_lea.hbm %s4, %s717
          %s720 = sshll.u32 %s710, 4
          %s721 = int_to_ptr.vmem [resolvable:$true] %s720
          %723 = dma.vmem_to_hbm [thread:$0]  %s721, 128, %s718, %s707
        $region48: #{tpu_custom_call.1} parent=35 // pred_fallthru
          _
      $region36: #{tpu_custom_call.1} parent=5 // pred_fallthru
        _
      %p724 = scmp.le.s32.totalorder 2, %s17
      // Predicated region
      $region49: #{tpu_custom_call.1} parent=5 // pred_check
        %p725 = pneg %p724
      $region50: #{tpu_custom_call.1} parent=5 // pred_check_branch
        %727 = sbr.rel (%p725) target = $region52
      $region51: #{tpu_custom_call.1} parent=5 // pred_region
        %s728 = ssub.s32 %s17, 2
        // Predicated region
        $region53: #{tpu_custom_call.1} parent=51 // pred_check
          %p729 = pneg %p135
        $region54: #{tpu_custom_call.1} parent=51 // pred_check_branch
          %731 = sbr.rel (%p729) target = $region56
        $region55: #{tpu_custom_call.1} parent=51 // pred_region
          %s732 = sand.u32 %s120, 1
          %s733 = scalar_lea.sflag [#allocation4], %s732
          %s734 = sand.u32 %s120, 1
          %s735 = smul.addr %s734, 8
          %s736 = scalar_lea.vmem [#allocation7], %s735
          %737 = dma.done %s733, 128
        $region56: #{tpu_custom_call.1} parent=51 // pred_fallthru
          _
      $region52: #{tpu_custom_call.1} parent=5 // pred_fallthru
        _
    $region6: #{tpu_custom_call.1} parent=1 // loop_footer
      %s21 = sadd.s32 1, %s17
    $region7: #{tpu_custom_call.1} parent=1 // loop_footer_branch
      %16 = sbr.rel target = $region3
    $region8: #{tpu_custom_call.1} parent=1 // loop_exit
      _
    %738 = vsyncpa [#allocation3], 1
    %s739 = scalar_lea.sflag [#allocation3], 1
    %740 = vsyncpa %s739, 1
    %741 = vsyncpa [#allocation6], 1
    %742 = vsyncpa [#allocation4], 1
    %s743 = scalar_lea.sflag [#allocation4], 1
    %744 = vsyncpa %s743, 1

</llo_original>
